<compile_context>
chip_gen: v7x
topology: tpu7x:2x2x1
jax: 0.10.0
libtpu: 0.0.40
codegen_flags: <defaults>
</compile_context>

<pallas_src>
import jax
import jax.numpy as jnp
from jax.experimental import pallas as pl
from jax.experimental.pallas import tpu as pltpu


# ---------------------------------------------------------------------------
# Kernel: one (tile_m, K) x (K, tile_n) matmul tile + bias, f32 accumulation.
# ---------------------------------------------------------------------------
def patch_embed_kernel(p_ref, w_ref, b_ref, o_ref):
    acc = jnp.dot(p_ref[...], w_ref[...], preferred_element_type=jnp.float32)
    o_ref[...] = (acc + b_ref[...]).astype(o_ref.dtype)


def _round_up(x, m):
    return (x + m - 1) // m * m


# ---------------------------------------------------------------------------
# Wrapper
# ---------------------------------------------------------------------------
def patch_embed_forward(x, w, b, *, patch_size, compute_dtype=jnp.bfloat16):
    """PatchEmbed.forward.

    x: (B, C, H, W) float32 image (PyTorch NCHW layout)
    w: (D, C, P, P) Conv2d weight
    b: (D,)        Conv2d bias
    returns (B, N, D) float32, N = (H // P) * (W // P)
    """
    B, C, H, W = x.shape
    P = patch_size
    D = w.shape[0]
    nh, nw = H // P, W // P
    N = nh * nw
    K = C * P * P
    rows = B * N

    # Patchify: Conv2d(kernel=stride=P) == matmul on (C, ph, pw)-flattened
    # patches.  Fused with the bf16 cast so the HBM intermediate is half-width.
    # TODO(synk): fold this gather into the kernel via an index_map over
    # (b, patch-row) image blocks to avoid the extra HBM pass for very large
    # images; kept in XLA because the in-kernel (C,P,W)->(nw,K) relayout is
    # not cleanly supported by Mosaic.
    patches = (
        x.reshape(B, C, nh, P, nw, P)
        .transpose(0, 2, 4, 1, 3, 5)
        .reshape(rows, K)
        .astype(compute_dtype)
    )
    w2d = w.reshape(D, K).T.astype(compute_dtype)          # (K, D)
    b2d = b.reshape(1, D).astype(jnp.float32)

    # Lane-dense embed dim: pad D up to a multiple of 128 (zero weight/bias
    # columns) so output stores are unmasked full-lane vst.  Real ViT dims
    # (768, 1024, ...) are already aligned and this is a no-op.
    D_p = _round_up(D, 128)
    if D_p != D:
        w2d = jnp.pad(w2d, ((0, 0), (0, D_p - D)))
        b2d = jnp.pad(b2d, ((0, 0), (0, D_p - D)))

    # ---- tile selection against a VMEM working-set budget -----------------
    in_bytes, out_bytes = 2, 4                       # bf16 operands, f32 out
    # Column tile: keep the whole weight resident in VMEM whenever it fits
    # comfortably (block index constant across the grid -> single HBM pass);
    # otherwise fall back to 256/128-wide column tiles.
    if 2 * K * D_p * in_bytes <= 16 * 1024 * 1024:
        tile_n = D_p
    elif D_p % 256 == 0:
        tile_n = 256
    else:
        tile_n = 128

    # Row tile: biggest aligned tile (<= 512 rows) whose double-buffered
    # working set (patch tile + weight tile + f32 output tile) fits VMEM.
    budget = 40 * 1024 * 1024
    tile_m = 512 if rows >= 512 else _round_up(rows, 8)
    while tile_m > 8 and (2 * tile_m * K * in_bytes
                          + 2 * K * tile_n * in_bytes
                          + 2 * tile_m * tile_n * out_bytes) > budget:
        tile_m = _round_up(tile_m // 2, 8)

    rows_p = _round_up(rows, tile_m)
    if rows_p != rows:
        patches = jnp.pad(patches, ((0, rows_p - rows), (0, 0)))

    grid = (rows_p // tile_m, D_p // tile_n)

    cost = pl.CostEstimate(
        flops=2 * rows_p * K * D_p,
        transcendentals=0,
        bytes_accessed=rows_p * K * in_bytes + K * D_p * in_bytes
        + rows_p * D_p * out_bytes,
    )

    out = pl.pallas_call(
        patch_embed_kernel,
        out_shape=jax.ShapeDtypeStruct((rows_p, D_p), jnp.float32),
        grid_spec=pltpu.PrefetchScalarGridSpec(
            num_scalar_prefetch=0,
            grid=grid,
            in_specs=[
                pl.BlockSpec((tile_m, K), lambda i, j: (i, 0)),   # patches
                pl.BlockSpec((K, tile_n), lambda i, j: (0, j)),   # weight
                pl.BlockSpec((1, tile_n), lambda i, j: (0, j)),   # bias
            ],
            out_specs=pl.BlockSpec((tile_m, tile_n), lambda i, j: (i, j)),
        ),
        compiler_params=pltpu.CompilerParams(
            dimension_semantics=("parallel", "parallel"),
            vmem_limit_bytes=64 * 1024 * 1024,
        ),
        cost_estimate=cost,
    )(patches, w2d, b2d)

    return out[:rows, :D].reshape(B, N, D)


# ---------------------------------------------------------------------------
# Demo / self-check
# ---------------------------------------------------------------------------
if __name__ == "__main__":
    # Small config consistent with the module: img_size=32, patch_size=8,
    # in_chans=3, embed_dim=192 (exercises the lane-padding path and the
    # resident-weight path).
    B, C, H, W = 2, 3, 32, 32
    patch_size, embed_dim = 8, 192
    nh, nw = H // patch_size, W // patch_size
    N = nh * nw

    key = jax.random.PRNGKey(0)
    kx, kw, kb = jax.random.split(key, 3)
    x = jax.random.normal(kx, (B, C, H, W), jnp.float32)
    # Conv2d weight (D, C, P, P); trunc-normal std 0.02 like the ViT init.
    w = 0.02 * jax.random.truncated_normal(
        kw, -2.0, 2.0, (embed_dim, C, patch_size, patch_size), jnp.float32)
    b = 0.01 * jax.random.normal(kb, (embed_dim,), jnp.float32)

    out = patch_embed_forward(x, w, b, patch_size=patch_size)
    out = jax.block_until_ready(out)
    assert out.shape == (B, N, embed_dim)
    assert bool(jnp.all(jnp.isfinite(out)))

    # Independent f32 reference: the actual strided Conv2d + flatten/transpose.
    ref = jax.lax.conv_general_dilated(
        x, w, window_strides=(patch_size, patch_size), padding="VALID",
        dimension_numbers=("NCHW", "OIHW", "NCHW"))          # (B, D, nh, nw)
    ref = ref.reshape(B, embed_dim, N).transpose(0, 2, 1) + b.reshape(1, 1, -1)
    # bf16 operands with f32 accumulation -> loose-ish tolerance.
    assert bool(jnp.allclose(out, ref, rtol=2e-2, atol=2e-2))

    print("KERNEL_OK")
</pallas_src>

<mosaic_0001>
module attributes {stable_mosaic.version = 11 : i64} {
  func.func @patch_embed_kernel(%arg0: i32, %arg1: i32, %arg2: memref<32x192xbf16, #tpu.memory_space<vmem>>, %arg3: memref<192x256xbf16, #tpu.memory_space<vmem>>, %arg4: memref<1x256xf32, #tpu.memory_space<vmem>>, %arg5: memref<32x256xf32, #tpu.memory_space<vmem>>) attributes {dimension_semantics = [#tpu.dimension_semantics<parallel>, #tpu.dimension_semantics<parallel>], iteration_bounds = array<i64: 1, 1>, scalar_prefetch = 0 : i64, scratch_operands = 0 : i64, tpu.core_type = #tpu.core_type<tc>, window_params = [{transform_indices = @transform_0, window_bounds = array<i64: 32, 192>}, {transform_indices = @transform_1, window_bounds = array<i64: 192, 256>}, {transform_indices = @transform_2, window_bounds = array<i64: 1, 256>}, {transform_indices = @transform_3, window_bounds = array<i64: 32, 256>}]} {
    %c0 = arith.constant 0 : index
    %c0_0 = arith.constant 0 : index
    %0 = vector.load %arg2[%c0, %c0_0] : memref<32x192xbf16, #tpu.memory_space<vmem>>, vector<32x192xbf16>
    %c0_1 = arith.constant 0 : index
    %c0_2 = arith.constant 0 : index
    %1 = vector.load %arg3[%c0_1, %c0_2] : memref<192x256xbf16, #tpu.memory_space<vmem>>, vector<192x256xbf16>
    %cst = arith.constant dense<0.000000e+00> : vector<32x256xf32>
    %2 = tpu.matmul %0, %1, %cst {dimension_numbers = #tpu.dot_dimension_numbers<[1], [0], [0], [1], [0, 0, 1, 1], [], []>} : vector<32x192xbf16>, vector<192x256xbf16>, vector<32x256xf32> -> vector<32x256xf32>
    %c0_3 = arith.constant 0 : index
    %c0_4 = arith.constant 0 : index
    %3 = vector.load %arg4[%c0_3, %c0_4] : memref<1x256xf32, #tpu.memory_space<vmem>>, vector<1x256xf32>
    %4 = vector.broadcast %3 : vector<1x256xf32> to vector<32x256xf32>
    %5 = arith.addf %2, %4 : vector<32x256xf32>
    %c0_5 = arith.constant 0 : index
    %c0_6 = arith.constant 0 : index
    %6 = vector.load %arg5[%c0_5, %c0_6] : memref<32x256xf32, #tpu.memory_space<vmem>>, vector<32x256xf32>
    tpu.vector_store %arg5[%c0_5, %c0_6], %5 {strides = array<i32>} : memref<32x256xf32, #tpu.memory_space<vmem>>, vector<32x256xf32>,
    return
  }
  func.func @transform_0(%arg0: i32, %arg1: i32) -> (i32, i32) {
    %c0_i32 = arith.constant 0 : i32
    %c0_i32_0 = arith.constant 0 : i32
    return %arg0, %c0_i32 : i32, i32
  }
  func.func @transform_1(%arg0: i32, %arg1: i32) -> (i32, i32) {
    %c0_i32 = arith.constant 0 : i32
    %c0_i32_0 = arith.constant 0 : i32
    return %c0_i32, %arg1 : i32, i32
  }
  func.func @transform_2(%arg0: i32, %arg1: i32) -> (i32, i32) {
    %c0_i32 = arith.constant 0 : i32
    %c0_i32_0 = arith.constant 0 : i32
    return %c0_i32, %arg1 : i32, i32
  }
  func.func @transform_3(%arg0: i32, %arg1: i32) -> (i32, i32) {
    %c0_i32 = arith.constant 0 : i32
    return %arg0, %arg1 : i32, i32
  }
}

</mosaic_0001>

<llo_original>
// kernel: tpu_custom_call.1
$region0: #{tpu_custom_call.1}
  #allocation0 [shape = 'u32[]', space=smem, size = 0x4, offset = 0x4, fixed_abs, tag = 'smem constant byte address 0x4 - core index']
  #allocation1 [shape = 'u32[144,128]{1,0:T(1,128)}', space=vmem, size = 0x12000, scoped, tag = 'internal scratch']
  %s0 = inlined_call_operand.hbm [shape: bf16[32,192], index: 0, kind: input, shape index: {}]
  %s1 = inlined_call_operand.hbm [shape: bf16[192,256], index: 1, kind: input, shape index: {}]
  %s2 = inlined_call_operand.hbm [shape: f32[1,256], index: 2, kind: input, shape index: {}]
  %s3 = inlined_call_operand.hbm [shape: f32[32,256], index: 3, kind: output, shape index: {}]
  %s4 = sld [smem:[#allocation0]]
  $region34: #{tpu_custom_call.1} parent=0
    _
  %s6 = ssub.s32 1, %s4
  %s7 = scalar_select 0, %s6, %s4
  $region1: #{tpu_custom_call.1} parent=0
    #allocation2 [shape = 'u8[16384]{0}', space=vmem, size = 0x4000, scoped, tag = 'input window, operand 0, single buffered']
    #allocation3 [shape = 's32[1]{0}', space=sflag, size = 0x4, scoped, tag = 'scoped memory for tpu_custom_call.1']
    #allocation4 [shape = 's32[1]{0}', space=sflag, size = 0x4, scoped, tag = 'scoped memory for tpu_custom_call.1']
    #allocation5 [shape = 'u8[98304]{0}', space=vmem, size = 0x18000, scoped, tag = 'input window, operand 1, single buffered']
    #allocation6 [shape = 's32[1]{0}', space=sflag, size = 0x4, scoped, tag = 'scoped memory for tpu_custom_call.1']
    #allocation7 [shape = 'u8[1024]{0}', space=vmem, size = 0x400, scoped, tag = 'input window, operand 2, single buffered']
    #allocation8 [shape = 'u8[32768]{0}', space=vmem, size = 0x8000, scoped, tag = 'output window, operand 0, single buffered']
    %8 = vsyncpa [#allocation3], 0
    %9 = vsyncpa [#allocation6], 0
    %10 = vsyncpa [#allocation4], 0
    // Predicated region
    $region2: #{tpu_custom_call.1} parent=1 // pred_check
      _
    $region3: #{tpu_custom_call.1} parent=1 // pred_check_branch
      %12 = sbr.rel (0) target = $region5
    $region4: #{tpu_custom_call.1} parent=1 // pred_region
      %s14 = ssub.s32 512, 512
      %15 = vsyncadd [#allocation3], %s14
      %s16 = sshll.u32 [#allocation2], 4
      %s17 = int_to_ptr.vmem [resolvable:$true] %s16
      %22 = dma.hbm_to_vmem [thread:$0]  %s0, 512, %s17, [#allocation3], 128, 128, 8
    $region5: #{tpu_custom_call.1} parent=1 // pred_fallthru
      _
    // Predicated region
    $region6: #{tpu_custom_call.1} parent=1 // pred_check
      _
    $region7: #{tpu_custom_call.1} parent=1 // pred_check_branch
      %24 = sbr.rel (0) target = $region9
    $region8: #{tpu_custom_call.1} parent=1 // pred_region
      %s26 = ssub.s32 3072, 3072
      %27 = vsyncadd [#allocation6], %s26
      %s28 = sshll.u32 [#allocation5], 4
      %s29 = int_to_ptr.vmem [resolvable:$true] %s28
      %34 = dma.hbm_to_vmem [thread:$0]  %s1, 3072, %s29, [#allocation6], 128, 128, 8
    $region9: #{tpu_custom_call.1} parent=1 // pred_fallthru
      _
    // Predicated region
    $region10: #{tpu_custom_call.1} parent=1 // pred_check
      _
    $region11: #{tpu_custom_call.1} parent=1 // pred_check_branch
      %36 = sbr.rel (0) target = $region13
    $region12: #{tpu_custom_call.1} parent=1 // pred_region
      %s38 = ssub.s32 32, 32
      %39 = vsyncadd [#allocation6], %s38
      %s41 = sshll.u32 [#allocation7], 4
      %s42 = int_to_ptr.vmem [resolvable:$true] %s41
      %44 = dma.hbm_to_vmem [thread:$0]  %s2, 32, %s42, [#allocation6]
    $region13: #{tpu_custom_call.1} parent=1 // pred_fallthru
      _
    // Predicated region
    $region14: #{tpu_custom_call.1} parent=1 // pred_check
      _
    $region15: #{tpu_custom_call.1} parent=1 // pred_check_branch
      %46 = sbr.rel (0) target = $region17
    $region16: #{tpu_custom_call.1} parent=1 // pred_region
      %47 = dma.done [#allocation3], 512
    $region17: #{tpu_custom_call.1} parent=1 // pred_fallthru
      _
    // Predicated region
    $region18: #{tpu_custom_call.1} parent=1 // pred_check
      _
    $region19: #{tpu_custom_call.1} parent=1 // pred_check_branch
      %49 = sbr.rel (0) target = $region21
    $region20: #{tpu_custom_call.1} parent=1 // pred_region
      %50 = dma.done [#allocation6], 3072
    $region21: #{tpu_custom_call.1} parent=1 // pred_fallthru
      _
    // Predicated region
    $region22: #{tpu_custom_call.1} parent=1 // pred_check
      _
    $region23: #{tpu_custom_call.1} parent=1 // pred_check_branch
      %52 = sbr.rel (0) target = $region25
    $region24: #{tpu_custom_call.1} parent=1 // pred_region
      %53 = dma.done [#allocation6], 32
    $region25: #{tpu_custom_call.1} parent=1 // pred_fallthru
      _
    %v55 = vld [vmem:[#allocation2] sm:$0xff]
    %v56 = vld [vmem:[#allocation2 + $0x8] sm:$0xff]
    %v57 = vld [vmem:[#allocation2 + $0x10] sm:$0xff]
    %v58 = vld [vmem:[#allocation2 + $0x18] sm:$0xff]
    %v59 = vld [vmem:[#allocation5] sm:$0xff]
    %v60 = vld [vmem:[#allocation5 + $0x8] sm:$0xff]
    %v61 = vld [vmem:[#allocation5 + $0x10] sm:$0xff]
    %v62 = vld [vmem:[#allocation5 + $0x18] sm:$0xff]
    %v63 = vld [vmem:[#allocation5 + $0x20] sm:$0xff]
    %v64 = vld [vmem:[#allocation5 + $0x28] sm:$0xff]
    %v65 = vld [vmem:[#allocation5 + $0x30] sm:$0xff]
    %v66 = vld [vmem:[#allocation5 + $0x38] sm:$0xff]
    %v67 = vld [vmem:[#allocation5 + $0x40] sm:$0xff]
    %v68 = vld [vmem:[#allocation5 + $0x48] sm:$0xff]
    %v69 = vld [vmem:[#allocation5 + $0x50] sm:$0xff]
    %v70 = vld [vmem:[#allocation5 + $0x58] sm:$0xff]
    %v71 = vld [vmem:[#allocation5 + $0x60] sm:$0xff]
    %v72 = vld [vmem:[#allocation5 + $0x68] sm:$0xff]
    %v73 = vld [vmem:[#allocation5 + $0x70] sm:$0xff]
    %v74 = vld [vmem:[#allocation5 + $0x78] sm:$0xff]
    %v75 = vld [vmem:[#allocation5 + $0x80] sm:$0xff]
    %v76 = vld [vmem:[#allocation5 + $0x88] sm:$0xff]
    %v77 = vld [vmem:[#allocation5 + $0x90] sm:$0xff]
    %v78 = vld [vmem:[#allocation5 + $0x98] sm:$0xff]
    %v79 = vld [vmem:[#allocation5 + $0xa0] sm:$0xff]
    %v80 = vld [vmem:[#allocation5 + $0xa8] sm:$0xff]
    %v81 = vld [vmem:[#allocation5 + $0xb0] sm:$0xff]
    %v82 = vld [vmem:[#allocation5 + $0xb8] sm:$0xff]
    %v83 = vld [vmem:[#allocation7] sm:$0x3]
    %v85 = vlaneseq
    %v86 = vshrl.u32 %v85, 7
    %v87 = vsub.s32 0, %v86
    %v88 = vrot.slane %v83, %v87
    %v89 = vlaneseq
    %v90 = vshrl.u32 %v89, 7
    %v91 = vsub.s32 1, %v90
    %v92 = vrot.slane %v83, %v91
    %v99 = vunpack.c.l.b16 %v55
    %v100 = vunpack.c.h.b16 %v55
    %v101 = vunpack.c.l.b16 %v56
    %v102 = vunpack.c.h.b16 %v56
    %v103 = vunpack.c.l.b16 %v57
    %v104 = vunpack.c.h.b16 %v57
    %v105 = vunpack.c.l.b16 %v58
    %v106 = vunpack.c.h.b16 %v58
    %v107 = vpack.c.b16 %v101, %v99
    %v108 = vpack.c.b16 %v102, %v100
    %v109 = vpack.c.b16 %v105, %v103
    %v110 = vpack.c.b16 %v106, %v104
    %v137 = vunpack.c.l.b16 %v59
    %v138 = vunpack.c.h.b16 %v59
    %v139 = vunpack.c.l.b16 %v60
    %v140 = vunpack.c.h.b16 %v60
    %v141 = vunpack.c.l.b16 %v61
    %v142 = vunpack.c.h.b16 %v61
    %v143 = vunpack.c.l.b16 %v62
    %v144 = vunpack.c.h.b16 %v62
    %v145 = vunpack.c.l.b16 %v63
    %v146 = vunpack.c.h.b16 %v63
    %v147 = vunpack.c.l.b16 %v64
    %v148 = vunpack.c.h.b16 %v64
    %v149 = vunpack.c.l.b16 %v65
    %v150 = vunpack.c.h.b16 %v65
    %v151 = vunpack.c.l.b16 %v66
    %v152 = vunpack.c.h.b16 %v66
    %v153 = vunpack.c.l.b16 %v67
    %v154 = vunpack.c.h.b16 %v67
    %v155 = vunpack.c.l.b16 %v68
    %v156 = vunpack.c.h.b16 %v68
    %v157 = vunpack.c.l.b16 %v69
    %v158 = vunpack.c.h.b16 %v69
    %v159 = vunpack.c.l.b16 %v70
    %v160 = vunpack.c.h.b16 %v70
    %v161 = vunpack.c.l.b16 %v71
    %v162 = vunpack.c.h.b16 %v71
    %v163 = vunpack.c.l.b16 %v72
    %v164 = vunpack.c.h.b16 %v72
    %v165 = vunpack.c.l.b16 %v73
    %v166 = vunpack.c.h.b16 %v73
    %v167 = vunpack.c.l.b16 %v74
    %v168 = vunpack.c.h.b16 %v74
    %v169 = vunpack.c.l.b16 %v75
    %v170 = vunpack.c.h.b16 %v75
    %v171 = vunpack.c.l.b16 %v76
    %v172 = vunpack.c.h.b16 %v76
    %v173 = vunpack.c.l.b16 %v77
    %v174 = vunpack.c.h.b16 %v77
    %v175 = vunpack.c.l.b16 %v78
    %v176 = vunpack.c.h.b16 %v78
    %v177 = vunpack.c.l.b16 %v79
    %v178 = vunpack.c.h.b16 %v79
    %v179 = vunpack.c.l.b16 %v80
    %v180 = vunpack.c.h.b16 %v80
    %v181 = vunpack.c.l.b16 %v81
    %v182 = vunpack.c.h.b16 %v81
    %v183 = vunpack.c.l.b16 %v82
    %v184 = vunpack.c.h.b16 %v82
    %v185 = vpack.c.b16 %v139, %v137
    %v186 = vpack.c.b16 %v140, %v138
    %v187 = vpack.c.b16 %v143, %v141
    %v188 = vpack.c.b16 %v144, %v142
    %v189 = vpack.c.b16 %v147, %v145
    %v190 = vpack.c.b16 %v148, %v146
    %v191 = vpack.c.b16 %v151, %v149
    %v192 = vpack.c.b16 %v152, %v150
    %v193 = vpack.c.b16 %v155, %v153
    %v194 = vpack.c.b16 %v156, %v154
    %v195 = vpack.c.b16 %v159, %v157
    %v196 = vpack.c.b16 %v160, %v158
    %v197 = vpack.c.b16 %v163, %v161
    %v198 = vpack.c.b16 %v164, %v162
    %v199 = vpack.c.b16 %v167, %v165
    %v200 = vpack.c.b16 %v168, %v166
    %v201 = vpack.c.b16 %v171, %v169
    %v202 = vpack.c.b16 %v172, %v170
    %v203 = vpack.c.b16 %v175, %v173
    %v204 = vpack.c.b16 %v176, %v174
    %v205 = vpack.c.b16 %v179, %v177
    %v206 = vpack.c.b16 %v180, %v178
    %v207 = vpack.c.b16 %v183, %v181
    %v208 = vpack.c.b16 %v184, %v182
    %vm233 = vcmask 523264
    %v235 = vsel %vm233, %v108, 0
    %v238 = vsel %vm233, %v110, 0
    %240 = vmatprep.subr.bf16.mxu0 %v186
    %241 = vmatpush1.bf16.msra.mxu0 %v185
    %242 = vmatprep.subr.bf16.mxu0 %v188
    %243 = vmatpush1.bf16.msra.mxu0 %v187
    %244 = vmatprep.subr.bf16.mxu0 %v190
    %245 = vmatpush1.bf16.msra.mxu0 %v189
    %246 = vmatprep.subr.bf16.mxu0 %v192
    %247 = vmatpush1.bf16.msra.mxu0 %v191
    %248 = vmatprep.subr.bf16.mxu0 %v194
    %249 = vmatpush1.bf16.msra.mxu0 %v193
    %250 = vmatprep.subr.bf16.mxu0 %v196
    %251 = vmatpush1.bf16.msra.mxu0 %v195
    %252 = vmatprep.subr.bf16.mxu0 %v198
    %253 = vmatpush1.bf16.msra.mxu0 %v197
    %254 = vmatprep.subr.bf16.mxu0 %v200
    %255 = vmatpush1.bf16.msra.mxu0 %v199
    %256 = vmatprep.subr.bf16.mxu0 %v202
    %257 = vmatpush1.bf16.msra.mxu0 %v201
    %258 = vmatprep.subr.bf16.mxu0 %v204
    %259 = vmatpush1.bf16.msra.mxu0 %v203
    %260 = vmatprep.subr.bf16.mxu0 %v206
    %261 = vmatpush1.bf16.msra.mxu0 %v205
    %262 = vmatprep.subr.bf16.mxu0 %v208
    %263 = vmatpush1.bf16.msra.mxu0 %v207
    %264 = vmatprep.subr.bf16.mxu0 0
    %265 = vmatpush1.bf16.msra.mxu0 0
    %266 = vmatprep.subr.bf16.mxu0 0
    %267 = vmatpush1.bf16.msra.mxu0 0
    %268 = vmatprep.subr.bf16.mxu0 0
    %269 = vmatpush1.bf16.msra.mxu0 0
    %270 = vmatprep.subr.bf16.mxu0 0
    %271 = vmatpush1.bf16.msra.mxu0 0
    %272 = vmatprep.mubr.bf16.mxu0 %v235
    %273 = vmatmul.mubr.bf16.gmra.mrb[0].mxu0 %v107
    %v274 = vpop.f32.mrb[0].mxu0
    %v275 = vadd.f32 %v88, %v274
    %v276 = vpop.f32.mrb[0].mxu0
    %v277 = vadd.f32 %v92, %v276
    %v278 = vpop.f32.mrb[0].mxu0
    %v279 = vadd.f32 %v88, %v278
    %v280 = vpop.f32.mrb[0].mxu0
    %v281 = vadd.f32 %v92, %v280
    %282 = vmatprep.mubr.bf16.mxu0 %v238
    %283 = vmatmul.mubr.bf16.gmra.mrb[0].mxu0 %v109
    %v284 = vpop.f32.mrb[0].mxu0
    %v285 = vadd.f32 %v88, %v284
    %v286 = vpop.f32.mrb[0].mxu0
    %v287 = vadd.f32 %v92, %v286
    %v288 = vpop.f32.mrb[0].mxu0
    %v289 = vadd.f32 %v88, %v288
    %v290 = vpop.f32.mrb[0].mxu0
    %v291 = vadd.f32 %v92, %v290
    %292 = vdwg.mxu0
    %293 = vst [vmem:[#allocation8] sm:$0xff] %v275
    %294 = vst [vmem:[#allocation8 + $0x8] sm:$0xff] %v277
    %295 = vst [vmem:[#allocation8 + $0x10] sm:$0xff] %v279
    %296 = vst [vmem:[#allocation8 + $0x18] sm:$0xff] %v281
    %297 = vst [vmem:[#allocation8 + $0x20] sm:$0xff] %v285
    %298 = vst [vmem:[#allocation8 + $0x28] sm:$0xff] %v287
    %299 = vst [vmem:[#allocation8 + $0x30] sm:$0xff] %v289
    %300 = vst [vmem:[#allocation8 + $0x38] sm:$0xff] %v291
    // Predicated region
    $region26: #{tpu_custom_call.1} parent=1 // pred_check
      _
    $region27: #{tpu_custom_call.1} parent=1 // pred_check_branch
      %302 = sbr.rel (0) target = $region29
    $region28: #{tpu_custom_call.1} parent=1 // pred_region
      %s304 = ssub.s32 1024, 1024
      %305 = vsyncadd [#allocation4], %s304
      %s306 = sshll.u32 [#allocation8], 4
      %s307 = int_to_ptr.vmem [resolvable:$true] %s306
      %312 = dma.vmem_to_hbm [thread:$0]  %s307, 1024, %s3, [#allocation4], 256, 256, 16
    $region29: #{tpu_custom_call.1} parent=1 // pred_fallthru
      _
    // Predicated region
    $region30: #{tpu_custom_call.1} parent=1 // pred_check
      _
    $region31: #{tpu_custom_call.1} parent=1 // pred_check_branch
      %314 = sbr.rel (0) target = $region33
    $region32: #{tpu_custom_call.1} parent=1 // pred_region
      %315 = dma.done [#allocation4], 1024
    $region33: #{tpu_custom_call.1} parent=1 // pred_fallthru
      _
    %316 = vsyncpa [#allocation3], 1
    %317 = vsyncpa [#allocation6], 1
    %318 = vsyncpa [#allocation4], 1

</llo_original>
